<compile_context>
chip_gen: v7x
topology: tpu7x:2x2x1
jax: 0.10.0
libtpu: 0.0.40
codegen_flags: <defaults>
</compile_context>

<pallas_src>
import functools

import jax
import jax.numpy as jnp
from jax.experimental import pallas as pl
from jax.experimental.pallas import tpu as pltpu


def _mlp_kernel(xt_ref, w1_ref, b1_ref, w2_ref, b2_ref, w3_ref, b3_ref, o_ref):
    # xt_ref: (F, block_b) bf16   -- batch on lanes
    # w1_ref: (256, F)    bf16    -- PyTorch (out, in) layout
    # b1_ref: (256, 1)    f32
    # w2_ref: (10, 256)   bf16
    # b2_ref: (10, 1)     f32
    # w3_ref: (10, 1)     f32     -- column form of PyTorch (1, 10)
    # b3_ref: (1, 1)      f32
    # o_ref : (1, block_b) f32    -- lane-dense output tile
    xt = xt_ref[...]

    # Layer 1: (256, F) @ (F, block_b) -> (256, block_b), bf16 MXU, f32 accum.
    h1 = jnp.dot(w1_ref[...], xt, preferred_element_type=jnp.float32) + b1_ref[...]
    h1 = jnp.maximum(h1, 0.0)

    # Layer 2: (10, 256) @ (256, block_b) -> (10, block_b), bf16 MXU, f32 accum.
    h2 = jnp.dot(w2_ref[...], h1.astype(w2_ref.dtype),
                 preferred_element_type=jnp.float32) + b2_ref[...]
    h2 = jnp.maximum(h2, 0.0)

    # Layer 3: (10 -> 1) as VPU multiply + sublane reduce (skip the MXU).
    h3 = jnp.sum(h2 * w3_ref[...], axis=0, keepdims=True) + b3_ref[...]
    h3 = jnp.maximum(h3, 0.0)

    o_ref[...] = h3.astype(o_ref.dtype)


@functools.partial(jax.jit, static_argnames=("block_b",))
def my_network_forward(x, w1, b1, w2, b2, w3, b3, *, block_b=512):
    """Fused MLP forward.

    x:  (B, F) float32
    w1: (256, F), b1: (256,)   -- PyTorch nn.Linear layout (out, in)
    w2: (10, 256), b2: (10,)
    w3: (1, 10),   b3: (1,)
    Returns (B, 1) float32.
    """
    assert block_b % 128 == 0, "block_b must be a multiple of 128 (lane width)"
    B, F = x.shape
    H1 = w1.shape[0]   # 256
    H2 = w2.shape[0]   # 10

    n_tiles = pl.cdiv(B, block_b)
    B_pad = n_tiles * block_b

    # Layout plumbing in the wrapper: transpose to batch-on-lanes, zero-pad
    # the ragged last tile, and cast MXU operands to bf16 (f32 accumulation
    # happens in-kernel).
    xt = x.T                                   # (F, B)
    if B_pad != B:
        xt = jnp.pad(xt, ((0, 0), (0, B_pad - B)))
    xt = xt.astype(jnp.bfloat16)

    w1b = w1.astype(jnp.bfloat16)              # (256, F)
    w2b = w2.astype(jnp.bfloat16)              # (10, 256)
    b1c = b1.reshape(H1, 1).astype(jnp.float32)
    b2c = b2.reshape(H2, 1).astype(jnp.float32)
    w3c = w3.reshape(H2, 1).astype(jnp.float32)   # (10, 1) column
    b3c = b3.reshape(1, 1).astype(jnp.float32)

    out_t = pl.pallas_call(
        _mlp_kernel,
        out_shape=jax.ShapeDtypeStruct((1, B_pad), jnp.float32),
        grid=(n_tiles,),
        in_specs=[
            pl.BlockSpec((F, block_b), lambda i: (0, i)),   # x tile (batch on lanes)
            pl.BlockSpec((H1, F), lambda i: (0, 0)),        # w1 (resident)
            pl.BlockSpec((H1, 1), lambda i: (0, 0)),        # b1
            pl.BlockSpec((H2, H1), lambda i: (0, 0)),       # w2
            pl.BlockSpec((H2, 1), lambda i: (0, 0)),        # b2
            pl.BlockSpec((H2, 1), lambda i: (0, 0)),        # w3 (column)
            pl.BlockSpec((1, 1), lambda i: (0, 0)),         # b3
        ],
        out_specs=pl.BlockSpec((1, block_b), lambda i: (0, i)),  # lane-dense
        compiler_params=pltpu.CompilerParams(
            dimension_semantics=("parallel",),
        ),
    )(xt, w1b, b1c, w2b, b2c, w3c, b3c)

    return out_t[0, :B].reshape(B, 1)


def init_params(key, feature):
    """nn.Linear-style init, PyTorch (out, in) weight layout."""
    dims = [(feature, 256), (256, 10), (10, 1)]
    params = []
    for fan_in, fan_out in dims:
        key, kw, kb = jax.random.split(key, 3)
        bound = 1.0 / jnp.sqrt(fan_in)
        w = jax.random.uniform(kw, (fan_out, fan_in), jnp.float32, -bound, bound)
        b = jax.random.uniform(kb, (fan_out,), jnp.float32, -bound, bound)
        params += [w, b]
    return params


if __name__ == "__main__":
    key = jax.random.PRNGKey(0)
    kx, kp = jax.random.split(key)

    batch = 200      # small; deliberately not a multiple of block_b (tests padding)
    feature = 32     # "feature" constructor arg of MyNetwork

    x = jax.random.normal(kx, (batch, feature), dtype=jnp.float32)
    w1, b1, w2, b2, w3, b3 = init_params(kp, feature)

    out = my_network_forward(x, w1, b1, w2, b2, w3, b3, block_b=128)
    out = jax.block_until_ready(out)
    assert out.shape == (batch, 1)

    # Reference matching the kernel's numerics (bf16 MXU operands, f32 accum).
    bf16 = jnp.bfloat16
    h1 = jnp.maximum(jnp.dot(x.astype(bf16), w1.T.astype(bf16),
                             preferred_element_type=jnp.float32) + b1, 0.0)
    h2 = jnp.maximum(jnp.dot(h1.astype(bf16), w2.T.astype(bf16),
                             preferred_element_type=jnp.float32) + b2, 0.0)
    ref = jnp.maximum(h2 @ w3.T + b3, 0.0)
    assert jnp.allclose(out, ref, atol=1e-4, rtol=1e-3)

    print("KERNEL_OK")
</pallas_src>

<mosaic_0001>
module attributes {stable_mosaic.version = 11 : i64} {
  func.func @_mlp_kernel(%arg0: i32, %arg1: memref<32x128xbf16, #tpu.memory_space<vmem>>, %arg2: memref<256x32xbf16, #tpu.memory_space<vmem>>, %arg3: memref<256x1xf32, #tpu.memory_space<vmem>>, %arg4: memref<10x256xbf16, #tpu.memory_space<vmem>>, %arg5: memref<10x1xf32, #tpu.memory_space<vmem>>, %arg6: memref<10x1xf32, #tpu.memory_space<vmem>>, %arg7: memref<1x1xf32, #tpu.memory_space<vmem>>, %arg8: memref<1x128xf32, #tpu.memory_space<vmem>>) attributes {dimension_semantics = [#tpu.dimension_semantics<parallel>], iteration_bounds = array<i64: 2>, scalar_prefetch = 0 : i64, scratch_operands = 0 : i64, tpu.core_type = #tpu.core_type<tc>, window_params = [{transform_indices = @transform_0, window_bounds = array<i64: 32, 128>}, {pipeline_mode = #tpu.pipeline_mode<synchronous>, transform_indices = @transform_1, window_bounds = array<i64: 256, 32>}, {pipeline_mode = #tpu.pipeline_mode<synchronous>, transform_indices = @transform_2, window_bounds = array<i64: 256, 1>}, {pipeline_mode = #tpu.pipeline_mode<synchronous>, transform_indices = @transform_3, window_bounds = array<i64: 10, 256>}, {pipeline_mode = #tpu.pipeline_mode<synchronous>, transform_indices = @transform_4, window_bounds = array<i64: 10, 1>}, {pipeline_mode = #tpu.pipeline_mode<synchronous>, transform_indices = @transform_5, window_bounds = array<i64: 10, 1>}, {pipeline_mode = #tpu.pipeline_mode<synchronous>, transform_indices = @transform_6, window_bounds = array<i64: 1, 1>}, {transform_indices = @transform_7, window_bounds = array<i64: 1, 128>}]} {
    %c0 = arith.constant 0 : index
    %c0_0 = arith.constant 0 : index
    %0 = vector.load %arg1[%c0, %c0_0] : memref<32x128xbf16, #tpu.memory_space<vmem>>, vector<32x128xbf16>
    %c0_1 = arith.constant 0 : index
    %c0_2 = arith.constant 0 : index
    %1 = vector.load %arg2[%c0_1, %c0_2] : memref<256x32xbf16, #tpu.memory_space<vmem>>, vector<256x32xbf16>
    %cst = arith.constant dense<0.000000e+00> : vector<256x128xf32>
    %2 = tpu.matmul %1, %0, %cst {dimension_numbers = #tpu.dot_dimension_numbers<[1], [0], [0], [1], [0, 0, 1, 1], [], []>} : vector<256x32xbf16>, vector<32x128xbf16>, vector<256x128xf32> -> vector<256x128xf32>
    %c0_3 = arith.constant 0 : index
    %c0_4 = arith.constant 0 : index
    %3 = vector.load %arg3[%c0_3, %c0_4] : memref<256x1xf32, #tpu.memory_space<vmem>>, vector<256x1xf32>
    %4 = vector.broadcast %3 : vector<256x1xf32> to vector<256x128xf32>
    %5 = arith.addf %2, %4 : vector<256x128xf32>
    %cst_5 = arith.constant 0.000000e+00 : f32
    %6 = vector.broadcast %cst_5 : f32 to vector<256x128xf32>
    %7 = arith.maximumf %5, %6 : vector<256x128xf32>
    %c0_6 = arith.constant 0 : index
    %c0_7 = arith.constant 0 : index
    %8 = vector.load %arg4[%c0_6, %c0_7] : memref<10x256xbf16, #tpu.memory_space<vmem>>, vector<10x256xbf16>
    %9 = arith.truncf %7 : vector<256x128xf32> to vector<256x128xbf16>
    %cst_8 = arith.constant dense<0.000000e+00> : vector<10x128xf32>
    %10 = tpu.matmul %8, %9, %cst_8 {dimension_numbers = #tpu.dot_dimension_numbers<[1], [0], [0], [1], [0, 0, 1, 1], [], []>} : vector<10x256xbf16>, vector<256x128xbf16>, vector<10x128xf32> -> vector<10x128xf32>
    %c0_9 = arith.constant 0 : index
    %c0_10 = arith.constant 0 : index
    %11 = vector.load %arg5[%c0_9, %c0_10] : memref<10x1xf32, #tpu.memory_space<vmem>>, vector<10x1xf32>
    %12 = vector.broadcast %11 : vector<10x1xf32> to vector<10x128xf32>
    %13 = arith.addf %10, %12 : vector<10x128xf32>
    %cst_11 = arith.constant 0.000000e+00 : f32
    %14 = vector.broadcast %cst_11 : f32 to vector<10x128xf32>
    %15 = arith.maximumf %13, %14 : vector<10x128xf32>
    %c0_12 = arith.constant 0 : index
    %c0_13 = arith.constant 0 : index
    %16 = vector.load %arg6[%c0_12, %c0_13] : memref<10x1xf32, #tpu.memory_space<vmem>>, vector<10x1xf32>
    %17 = vector.broadcast %16 : vector<10x1xf32> to vector<10x128xf32>
    %18 = arith.mulf %15, %17 : vector<10x128xf32>
    %cst_14 = arith.constant dense<0.000000e+00> : vector<128xf32>
    %19 = vector.multi_reduction <add>, %18, %cst_14 [0] : vector<10x128xf32> to vector<128xf32>
    %20 = vector.shape_cast %19 : vector<128xf32> to vector<1x128xf32>
    %c0_15 = arith.constant 0 : index
    %c0_16 = arith.constant 0 : index
    %21 = vector.load %arg7[%c0_15, %c0_16] : memref<1x1xf32, #tpu.memory_space<vmem>>, vector<1x1xf32>
    %22 = vector.broadcast %21 : vector<1x1xf32> to vector<1x128xf32>
    %23 = arith.addf %20, %22 : vector<1x128xf32>
    %cst_17 = arith.constant 0.000000e+00 : f32
    %24 = vector.broadcast %cst_17 : f32 to vector<1x128xf32>
    %25 = arith.maximumf %23, %24 : vector<1x128xf32>
    %c0_18 = arith.constant 0 : index
    %c0_19 = arith.constant 0 : index
    %26 = vector.load %arg8[%c0_18, %c0_19] : memref<1x128xf32, #tpu.memory_space<vmem>>, vector<1x128xf32>
    tpu.vector_store %arg8[%c0_18, %c0_19], %25 {strides = array<i32>} : memref<1x128xf32, #tpu.memory_space<vmem>>, vector<1x128xf32>,
    return
  }
  func.func @transform_0(%arg0: i32) -> (i32, i32) {
    %c0_i32 = arith.constant 0 : i32
    %c0_i32_0 = arith.constant 0 : i32
    return %c0_i32, %arg0 : i32, i32
  }
  func.func @transform_1(%arg0: i32) -> (i32, i32) {
    %c0_i32 = arith.constant 0 : i32
    %c0_i32_0 = arith.constant 0 : i32
    %c0_i32_1 = arith.constant 0 : i32
    return %c0_i32, %c0_i32_0 : i32, i32
  }
  func.func @transform_2(%arg0: i32) -> (i32, i32) {
    %c0_i32 = arith.constant 0 : i32
    %c0_i32_0 = arith.constant 0 : i32
    %c0_i32_1 = arith.constant 0 : i32
    return %c0_i32, %c0_i32_0 : i32, i32
  }
  func.func @transform_3(%arg0: i32) -> (i32, i32) {
    %c0_i32 = arith.constant 0 : i32
    %c0_i32_0 = arith.constant 0 : i32
    %c0_i32_1 = arith.constant 0 : i32
    return %c0_i32, %c0_i32_0 : i32, i32
  }
  func.func @transform_4(%arg0: i32) -> (i32, i32) {
    %c0_i32 = arith.constant 0 : i32
    %c0_i32_0 = arith.constant 0 : i32
    %c0_i32_1 = arith.constant 0 : i32
    return %c0_i32, %c0_i32_0 : i32, i32
  }
  func.func @transform_5(%arg0: i32) -> (i32, i32) {
    %c0_i32 = arith.constant 0 : i32
    %c0_i32_0 = arith.constant 0 : i32
    %c0_i32_1 = arith.constant 0 : i32
    return %c0_i32, %c0_i32_0 : i32, i32
  }
  func.func @transform_6(%arg0: i32) -> (i32, i32) {
    %c0_i32 = arith.constant 0 : i32
    %c0_i32_0 = arith.constant 0 : i32
    %c0_i32_1 = arith.constant 0 : i32
    return %c0_i32, %c0_i32_0 : i32, i32
  }
  func.func @transform_7(%arg0: i32) -> (i32, i32) {
    %c0_i32 = arith.constant 0 : i32
    %c0_i32_0 = arith.constant 0 : i32
    return %c0_i32, %arg0 : i32, i32
  }
}

</mosaic_0001>

<llo_original>
// kernel: my_network_forward.1
$region0: #{my_network_forward.1}
  #allocation0 [shape = 'u32[]', space=smem, size = 0x4, offset = 0x4, fixed_abs, tag = 'smem constant byte address 0x4 - core index']
  #allocation1 [shape = 'u32[144,128]{1,0:T(1,128)}', space=vmem, size = 0x12000, scoped, tag = 'internal scratch']
  #allocation2 [shape = 'f32[1,1]{1,0:T(1,128)S(1)}', space=vmem, size = 0x200, scoped, tag = 'scoped memory for my_network_forward.1']
  %s0 = inlined_call_operand.vmem [shape: bf16[32,256], index: 0, kind: input, shape index: {}]
  %s1 = inlined_call_operand.vmem [shape: bf16[256,32], index: 1, kind: input, shape index: {}]
  %s2 = inlined_call_operand.vmem [shape: f32[256,1], index: 2, kind: input, shape index: {}]
  %s3 = inlined_call_operand.vmem [shape: bf16[10,256], index: 3, kind: input, shape index: {}]
  %s4 = inlined_call_operand.vmem [shape: f32[10,1], index: 4, kind: input, shape index: {}]
  %s5 = inlined_call_operand.vmem [shape: f32[10,1], index: 5, kind: input, shape index: {}]
  %s6 = inlined_call_operand.<no memory space> [shape: f32[1,1], index: 6, kind: input, shape index: {}]
  %s7 = inlined_call_operand.vmem [shape: f32[1,256], index: 7, kind: output, shape index: {}]
  %s8 = sld [smem:[#allocation0]]
  $region102: #{my_network_forward.1} parent=0
    _
  %s10 = ssub.s32 1, %s8
  %s11 = scalar_select 0, %s10, %s8
  %v12 = vstv %s6
  %13 = vst [vmem:[#allocation2] sm:$0x1] %v12
  $region1: #{my_network_forward.1} parent=0
    #allocation3 [shape = 'u8[16384]{0}', space=vmem, size = 0x4000, scoped, tag = 'input window, operand 0']
    loop: start=0, step=1, limit=4
    $region2: #{my_network_forward.1} parent=1 // loop_pre_header
      _
    $region3: #{my_network_forward.1} parent=1 // loop_header
      %s15 = sphi 0, %s19
      %p16 = scmp.ge.s32.totalorder %s15, 4
      %s25 = sphi 0, %s27
      %s28 = sphi 0, %s25
      %s29 = sphi 0, %s28
      %s45 = sphi 0, %s29
      %s49 = sphi 0, %s49
      %s51 = sphi 0, %s49
      %s52 = sphi 0, %s51
      %s66 = sphi 0, %s52
      %s70 = sphi 0, %s70
      %s72 = sphi 0, %s70
      %s73 = sphi 0, %s72
      %s87 = sphi 0, %s73
      %s91 = sphi 0, %s91
      %s93 = sphi 0, %s91
      %s94 = sphi 0, %s93
      %s108 = sphi 0, %s94
      %s112 = sphi 0, %s112
      %s114 = sphi 0, %s112
      %s115 = sphi 0, %s114
      %s129 = sphi 0, %s115
      %s133 = sphi 0, %s133
      %s135 = sphi 0, %s133
      %s136 = sphi 0, %s135
      %s150 = sphi 0, %s136
      %s154 = sphi 0, %s154
      %s156 = sphi 0, %s154
      %s157 = sphi 0, %s156
      %s171 = sphi 0, %s157
      %s177 = sphi 0, %s179
      %s180 = sphi 0, %s177
      %s181 = sphi 0, %s180
      %s197 = sphi 0, %s181
    $region4: #{my_network_forward.1} parent=1 // loop_header_branch
      %18 = sbr.rel (%p16) target = $region8
    $region5: #{my_network_forward.1} parent=1 // loop_body
      %s20 = ssub.s32 %s15, 1
      %s21 = ssub.s32 %s15, 2
      %s22 = sadd.s32 %s15, 1
      %s23 = ssub.s32 %s15, %s22
      %p24 = scmp.eq.s32.totalorder %s23, 0
      %s26 = sadd.s32 %s25, 1
      %s27 = scalar_select %p24, %s25, %s26
      %p30 = pneg %p24
      %p31 = scmp.eq.s32.totalorder %s15, 1
      %p32 = por %p30, %p31
      %p33 = scmp.ne.s32.totalorder %s25, %s28
      %p34 = scmp.eq.s32.totalorder %s15, 0
      %p35 = por %p33, %p34
      %p36 = scmp.ne.s32.totalorder %s25, %s28
      %p37 = scmp.eq.s32.totalorder %s20, 1
      %p38 = por %p36, %p37
      %p39 = scmp.ne.s32.totalorder %s28, %s29
      %p40 = scmp.eq.s32.totalorder %s20, 0
      %p41 = por %p39, %p40
      %p42 = scmp.ne.s32.totalorder %s28, %s29
      %p43 = scmp.eq.s32.totalorder %s21, 1
      %p44 = por %p42, %p43
      %p46 = scmp.ne.s32.totalorder %s29, %s45
      %p47 = scmp.eq.s32.totalorder %s21, 0
      %p48 = por %p46, %p47
      %s50 = sadd.s32 %s49, 1
      %p53 = scmp.eq.s32.totalorder %s15, 1
      %p54 = scmp.ne.s32.totalorder %s49, %s51
      %p55 = scmp.eq.s32.totalorder %s15, 0
      %p56 = por %p54, %p55
      %p57 = scmp.ne.s32.totalorder %s49, %s51
      %p58 = scmp.eq.s32.totalorder %s20, 1
      %p59 = por %p57, %p58
      %p60 = scmp.ne.s32.totalorder %s51, %s52
      %p61 = scmp.eq.s32.totalorder %s20, 0
      %p62 = por %p60, %p61
      %p63 = scmp.ne.s32.totalorder %s51, %s52
      %p64 = scmp.eq.s32.totalorder %s21, 1
      %p65 = por %p63, %p64
      %p67 = scmp.ne.s32.totalorder %s52, %s66
      %p68 = scmp.eq.s32.totalorder %s21, 0
      %p69 = por %p67, %p68
      %s71 = sadd.s32 %s70, 1
      %p74 = scmp.eq.s32.totalorder %s15, 1
      %p75 = scmp.ne.s32.totalorder %s70, %s72
      %p76 = scmp.eq.s32.totalorder %s15, 0
      %p77 = por %p75, %p76
      %p78 = scmp.ne.s32.totalorder %s70, %s72
      %p79 = scmp.eq.s32.totalorder %s20, 1
      %p80 = por %p78, %p79
      %p81 = scmp.ne.s32.totalorder %s72, %s73
      %p82 = scmp.eq.s32.totalorder %s20, 0
      %p83 = por %p81, %p82
      %p84 = scmp.ne.s32.totalorder %s72, %s73
      %p85 = scmp.eq.s32.totalorder %s21, 1
      %p86 = por %p84, %p85
      %p88 = scmp.ne.s32.totalorder %s73, %s87
      %p89 = scmp.eq.s32.totalorder %s21, 0
      %p90 = por %p88, %p89
      %s92 = sadd.s32 %s91, 1
      %p95 = scmp.eq.s32.totalorder %s15, 1
      %p96 = scmp.ne.s32.totalorder %s91, %s93
      %p97 = scmp.eq.s32.totalorder %s15, 0
      %p98 = por %p96, %p97
      %p99 = scmp.ne.s32.totalorder %s91, %s93
      %p100 = scmp.eq.s32.totalorder %s20, 1
      %p101 = por %p99, %p100
      %p102 = scmp.ne.s32.totalorder %s93, %s94
      %p103 = scmp.eq.s32.totalorder %s20, 0
      %p104 = por %p102, %p103
      %p105 = scmp.ne.s32.totalorder %s93, %s94
      %p106 = scmp.eq.s32.totalorder %s21, 1
      %p107 = por %p105, %p106
      %p109 = scmp.ne.s32.totalorder %s94, %s108
      %p110 = scmp.eq.s32.totalorder %s21, 0
      %p111 = por %p109, %p110
      %s113 = sadd.s32 %s112, 1
      %p116 = scmp.eq.s32.totalorder %s15, 1
      %p117 = scmp.ne.s32.totalorder %s112, %s114
      %p118 = scmp.eq.s32.totalorder %s15, 0
      %p119 = por %p117, %p118
      %p120 = scmp.ne.s32.totalorder %s112, %s114
      %p121 = scmp.eq.s32.totalorder %s20, 1
      %p122 = por %p120, %p121
      %p123 = scmp.ne.s32.totalorder %s114, %s115
      %p124 = scmp.eq.s32.totalorder %s20, 0
      %p125 = por %p123, %p124
      %p126 = scmp.ne.s32.totalorder %s114, %s115
      %p127 = scmp.eq.s32.totalorder %s21, 1
      %p128 = por %p126, %p127
      %p130 = scmp.ne.s32.totalorder %s115, %s129
      %p131 = scmp.eq.s32.totalorder %s21, 0
      %p132 = por %p130, %p131
      %s134 = sadd.s32 %s133, 1
      %p137 = scmp.eq.s32.totalorder %s15, 1
      %p138 = scmp.ne.s32.totalorder %s133, %s135
      %p139 = scmp.eq.s32.totalorder %s15, 0
      %p140 = por %p138, %p139
      %p141 = scmp.ne.s32.totalorder %s133, %s135
      %p142 = scmp.eq.s32.totalorder %s20, 1
      %p143 = por %p141, %p142
      %p144 = scmp.ne.s32.totalorder %s135, %s136
      %p145 = scmp.eq.s32.totalorder %s20, 0
      %p146 = por %p144, %p145
      %p147 = scmp.ne.s32.totalorder %s135, %s136
      %p148 = scmp.eq.s32.totalorder %s21, 1
      %p149 = por %p147, %p148
      %p151 = scmp.ne.s32.totalorder %s136, %s150
      %p152 = scmp.eq.s32.totalorder %s21, 0
      %p153 = por %p151, %p152
      %s155 = sadd.s32 %s154, 1
      %p158 = scmp.eq.s32.totalorder %s15, 1
      %p159 = scmp.ne.s32.totalorder %s154, %s156
      %p160 = scmp.eq.s32.totalorder %s15, 0
      %p161 = por %p159, %p160
      %p162 = scmp.ne.s32.totalorder %s154, %s156
      %p163 = scmp.eq.s32.totalorder %s20, 1
      %p164 = por %p162, %p163
      %p165 = scmp.ne.s32.totalorder %s156, %s157
      %p166 = scmp.eq.s32.totalorder %s20, 0
      %p167 = por %p165, %p166
      %p168 = scmp.ne.s32.totalorder %s156, %s157
      %p169 = scmp.eq.s32.totalorder %s21, 1
      %p170 = por %p168, %p169
      %p172 = scmp.ne.s32.totalorder %s157, %s171
      %p173 = scmp.eq.s32.totalorder %s21, 0
      %p174 = por %p172, %p173
      %s175 = ssub.s32 %s15, %s22
      %p176 = scmp.eq.s32.totalorder %s175, 0
      %s178 = sadd.s32 %s177, 1
      %s179 = scalar_select %p176, %s177, %s178
      %p182 = pneg %p176
      %p183 = scmp.eq.s32.totalorder %s15, 1
      %p184 = por %p182, %p183
      %p185 = scmp.ne.s32.totalorder %s177, %s180
      %p186 = scmp.eq.s32.totalorder %s15, 0
      %p187 = por %p185, %p186
      %p188 = scmp.ne.s32.totalorder %s177, %s180
      %p189 = scmp.eq.s32.totalorder %s20, 1
      %p190 = por %p188, %p189
      %p191 = scmp.ne.s32.totalorder %s180, %s181
      %p192 = scmp.eq.s32.totalorder %s20, 0
      %p193 = por %p191, %p192
      %p194 = scmp.ne.s32.totalorder %s180, %s181
      %p195 = scmp.eq.s32.totalorder %s21, 1
      %p196 = por %p194, %p195
      %p198 = scmp.ne.s32.totalorder %s181, %s197
      %p199 = scmp.eq.s32.totalorder %s21, 0
      %p200 = por %p198, %p199
      %p201 = scmp.le.s32.totalorder 1, %s15
      %p202 = scmp.lt.s32.totalorder %s15, 3
      %p203 = pnand %p201, %p202
      %p204 = pneg %p203
      // Predicated region
      $region9: #{my_network_forward.1} parent=5 // pred_check
        _
      $region10: #{my_network_forward.1} parent=5 // pred_check_branch
        %206 = sbr.rel (%p203) target = $region12
      $region11: #{my_network_forward.1} parent=5 // pred_region
        %s207 = ssub.s32 %s15, 1
        // Predicated region
        $region13: #{my_network_forward.1} parent=11 // pred_check
          %p208 = pneg %p62
        $region14: #{my_network_forward.1} parent=11 // pred_check_branch
          %210 = sbr.rel (%p208) target = $region16
        $region15: #{my_network_forward.1} parent=11 // pred_region
          _
        $region16: #{my_network_forward.1} parent=11 // pred_fallthru
          _
        // Predicated region
        $region17: #{my_network_forward.1} parent=11 // pred_check
          %p211 = pneg %p83
        $region18: #{my_network_forward.1} parent=11 // pred_check_branch
          %213 = sbr.rel (%p211) target = $region20
        $region19: #{my_network_forward.1} parent=11 // pred_region
          _
        $region20: #{my_network_forward.1} parent=11 // pred_fallthru
          _
        // Predicated region
        $region21: #{my_network_forward.1} parent=11 // pred_check
          %p214 = pneg %p104
        $region22: #{my_network_forward.1} parent=11 // pred_check_branch
          %216 = sbr.rel (%p214) target = $region24
        $region23: #{my_network_forward.1} parent=11 // pred_region
          _
        $region24: #{my_network_forward.1} parent=11 // pred_fallthru
          _
        // Predicated region
        $region25: #{my_network_forward.1} parent=11 // pred_check
          %p217 = pneg %p125
        $region26: #{my_network_forward.1} parent=11 // pred_check_branch
          %219 = sbr.rel (%p217) target = $region28
        $region27: #{my_network_forward.1} parent=11 // pred_region
          _
        $region28: #{my_network_forward.1} parent=11 // pred_fallthru
          _
        // Predicated region
        $region29: #{my_network_forward.1} parent=11 // pred_check
          %p220 = pneg %p146
        $region30: #{my_network_forward.1} parent=11 // pred_check_branch
          %222 = sbr.rel (%p220) target = $region32
        $region31: #{my_network_forward.1} parent=11 // pred_region
          _
        $region32: #{my_network_forward.1} parent=11 // pred_fallthru
          _
        // Predicated region
        $region33: #{my_network_forward.1} parent=11 // pred_check
          %p223 = pneg %p167
        $region34: #{my_network_forward.1} parent=11 // pred_check_branch
          %225 = sbr.rel (%p223) target = $region36
        $region35: #{my_network_forward.1} parent=11 // pred_region
          _
        $region36: #{my_network_forward.1} parent=11 // pred_fallthru
          _
      $region12: #{my_network_forward.1} parent=5 // pred_fallthru
        _
      %p226 = scmp.lt.s32.totalorder %s15, 2
      // Predicated region
      $region37: #{my_network_forward.1} parent=5 // pred_check
        %p227 = pneg %p226
      $region38: #{my_network_forward.1} parent=5 // pred_check_branch
        %229 = sbr.rel (%p227) target = $region40
      $region39: #{my_network_forward.1} parent=5 // pred_region
        // Predicated region
        $region41: #{my_network_forward.1} parent=39 // pred_check
          %p230 = pneg %p35
        $region42: #{my_network_forward.1} parent=39 // pred_check_branch
          %232 = sbr.rel (%p230) target = $region44
        $region43: #{my_network_forward.1} parent=39 // pred_region
          %s233 = sand.u32 %s25, 1
          %s234 = sand.u32 %s25, 1
          %s235 = smul.addr %s234, 16
          %s236 = scalar_lea.vmem [#allocation3], %s235
          %s237 = smul.addr %s15, 4
          %s238 = scalar_lea.vmem %s0, %s237
          // Predicated region
          $region45: #{my_network_forward.1} parent=43 // pred_check
            _
          $region46: #{my_network_forward.1} parent=43 // pred_check_branch
            %240 = sbr.rel (0) target = $region48
          $region47: #{my_network_forward.1} parent=43 // pred_region
            // Predicated region
            $region49: #{my_network_forward.1} parent=47 // pred_check
              _
            $region50: #{my_network_forward.1} parent=47 // pred_check_branch
              %242 = sbr.rel target = $region52
            $region51: #{my_network_forward.1} parent=47 // pred_region
              // Predicated region
              $region64: #{my_network_forward.1} parent=51 // pred_check
                _
              $region65: #{my_network_forward.1} parent=51 // pred_check_branch
                %263 = sbr.rel (0) target = $region67
              $region66: #{my_network_forward.1} parent=51 // pred_region
                loop: start=0, step=1, limit=1
                $region68: #{my_network_forward.1} parent=66 // loop_pre_header
                  _
                $region69: #{my_network_forward.1} parent=66 // loop_header
                  %s265 = sphi 0, %s269
                  %p266 = scmp.ge.s32.totalorder %s265, 1
                  %s270 = sphi %s238, %s238
                  %s271 = sphi %s236, %s236
                $region70: #{my_network_forward.1} parent=66 // loop_header_branch
                  %268 = sbr.rel (%p266) target = $region74
                $region71: #{my_network_forward.1} parent=66 // loop_body
                  _
                $region72: #{my_network_forward.1} parent=66 // loop_footer
                  %s269 = sadd.s32 1, %s265
                $region73: #{my_network_forward.1} parent=66 // loop_footer_branch
                  %264 = sbr.rel target = $region69
                $region74: #{my_network_forward.1} parent=66 // loop_exit
                  _
                loop: start=0, step=1, limit=1
                $region75: #{my_network_forward.1} parent=66 // loop_pre_header
                  _
                $region76: #{my_network_forward.1} parent=66 // loop_header
                  %s274 = sphi 0, %s278
                  %p275 = scmp.ge.s32.totalorder %s274, 1
                  %s279 = sphi %s238, %s238
                  %s280 = sphi %s236, %s236
                $region77: #{my_network_forward.1} parent=66 // loop_header_branch
                  %277 = sbr.rel (%p275) target = $region81
                $region78: #{my_network_forward.1} parent=66 // loop_body
                  %v281 = vld [vmem:[%s279] sm:$0xf]
                  %282 = vst [vmem:[%s280] sm:$0xf] %v281
                  %v283 = vld [vmem:[%s279 + $0x8] sm:$0xf]
                  %284 = vst [vmem:[%s280 + $0x4] sm:$0xf] %v283
                  %v285 = vld [vmem:[%s279 + $0x10] sm:$0xf]
                  %286 = vst [vmem:[%s280 + $0x8] sm:$0xf] %v285
                  %v287 = vld [vmem:[%s279 + $0x18] sm:$0xf]
                  %288 = vst [vmem:[%s280 + $0xc] sm:$0xf] %v287
                $region79: #{my_network_forward.1} parent=66 // loop_footer
                  %s278 = sadd.s32 1, %s274
                $region80: #{my_network_forward.1} parent=66 // loop_footer_branch
                  %273 = sbr.rel target = $region76
                $region81: #{my_network_forward.1} parent=66 // loop_exit
                  _
              $region67: #{my_network_forward.1} parent=51 // pred_fallthru
                _
            $region52: #{my_network_forward.1} parent=47 // pred_fallthru
              _
            // Predicated region
            $region53: #{my_network_forward.1} parent=47 // pred_check
              _
            $region54: #{my_network_forward.1} parent=47 // pred_check_branch
              %244 = sbr.rel (0) target = $region56
            $region55: #{my_network_forward.1} parent=47 // pred_region
              loop: start=0, step=1, limit=1
              $region57: #{my_network_forward.1} parent=55 // loop_pre_header
                _
              $region58: #{my_network_forward.1} parent=55 // loop_header
                %s247 = sphi 0, %s251
                %p248 = scmp.ge.s32.totalorder %s247, 1
                %s252 = sphi %s238, %s238
                %s253 = sphi %s236, %s236
              $region59: #{my_network_forward.1} parent=55 // loop_header_branch
                %250 = sbr.rel (%p248) target = $region63
              $region60: #{my_network_forward.1} parent=55 // loop_body
                %v254 = vld [vmem:[%s252] sm:$0xf]
                %255 = vst [vmem:[%s253] sm:$0xf] %v254
                %v256 = vld [vmem:[%s252 + $0x8] sm:$0xf]
                %257 = vst [vmem:[%s253 + $0x4] sm:$0xf] %v256
                %v258 = vld [vmem:[%s252 + $0x10] sm:$0xf]
                %259 = vst [vmem:[%s253 + $0x8] sm:$0xf] %v258
                %v260 = vld [vmem:[%s252 + $0x18] sm:$0xf]
                %261 = vst [vmem:[%s253 + $0xc] sm:$0xf] %v260
              $region61: #{my_network_forward.1} parent=55 // loop_footer
                %s251 = sadd.s32 1, %s247
              $region62: #{my_network_forward.1} parent=55 // loop_footer_branch
                %246 = sbr.rel target = $region58
              $region63: #{my_network_forward.1} parent=55 // loop_exit
                _
            $region56: #{my_network_forward.1} parent=47 // pred_fallthru
              _
          $region48: #{my_network_forward.1} parent=43 // pred_fallthru
            _
          %289 = vnop
        $region44: #{my_network_forward.1} parent=39 // pred_fallthru
          _
      $region40: #{my_network_forward.1} parent=5 // pred_fallthru
        _
      %p290 = scmp.le.s32.totalorder 1, %s15
      %p291 = scmp.lt.s32.totalorder %s15, 3
      %p292 = pnand %p290, %p291
      %p293 = pneg %p292
      // Predicated region
      $region82: #{my_network_forward.1} parent=5 // pred_check
        _
      $region83: #{my_network_forward.1} parent=5 // pred_check_branch
        %295 = sbr.rel (%p292) target = $region85
      $region84: #{my_network_forward.1} parent=5 // pred_region
        %s296 = ssub.s32 %s15, 1
        %s297 = sand.u32 %s28, 1
        %s298 = sand.u32 %s28, 1
        %s299 = smul.addr %s298, 16
        %s300 = scalar_lea.vmem [#allocation3], %s299
        // Predicated region
        $region86: #{my_network_forward.1} parent=84 // pred_check
          %p301 = pneg %p41
        $region87: #{my_network_forward.1} parent=84 // pred_check_branch
          %303 = sbr.rel (%p301) target = $region89
        $region88: #{my_network_forward.1} parent=84 // pred_region
          _
        $region89: #{my_network_forward.1} parent=84 // pred_fallthru
          _
        %s304 = sand.u32 %s28, 1
        %s305 = sand.u32 %s28, 1
        %s306 = smul.addr %s305, 16
        %s307 = scalar_lea.vmem [#allocation3], %s306
        %p308 = pneg %p41
        %p309 = pneg %p38
        %p310 = pneg %p62
        %p311 = pneg %p59
        %p312 = pneg %p83
        %p313 = pneg %p80
        %p314 = pneg %p104
        %p315 = pneg %p101
        %p316 = pneg %p125
        %p317 = pneg %p122
        %p318 = pneg %p146
        %p319 = pneg %p143
        %p320 = pneg %p167
        %p321 = pneg %p164
        %p322 = pneg %p193
        %p323 = pneg %p190
        %p324 = scmp.lt.s32.totalorder %s20, 1
        %s325 = scalar_select %p324, %s20, 1
        %s326 = scalar_lea.vmem %s7, %s325
        %p327 = scmp.lt.s32.totalorder %s20, 1
        %s328 = scalar_select %p327, %s20, 1
        %s329 = scalar_lea.vmem %s7, %s328
        %v331 = vld [vmem:[%s300] sm:$0xf]
        %v332 = vld [vmem:[%s300 + $0x4] sm:$0xf]
        %v333 = vld [vmem:[%s300 + $0x8] sm:$0xf]
        %v334 = vld [vmem:[%s300 + $0xc] sm:$0xf]
        %v335 = vld [vmem:[%s1] sm:$0xf]
        %v336 = vld [vmem:[%s1 + $0x4] sm:$0xf]
        %v337 = vld [vmem:[%s1 + $0x8] sm:$0xf]
        %v338 = vld [vmem:[%s1 + $0xc] sm:$0xf]
        %v339 = vld [vmem:[%s1 + $0x10] sm:$0xf]
        %v340 = vld [vmem:[%s1 + $0x14] sm:$0xf]
        %v341 = vld [vmem:[%s1 + $0x18] sm:$0xf]
        %v342 = vld [vmem:[%s1 + $0x1c] sm:$0xf]
        %v343 = vld [vmem:[%s1 + $0x20] sm:$0xf]
        %v344 = vld [vmem:[%s1 + $0x24] sm:$0xf]
        %v345 = vld [vmem:[%s1 + $0x28] sm:$0xf]
        %v346 = vld [vmem:[%s1 + $0x2c] sm:$0xf]
        %v347 = vld [vmem:[%s1 + $0x30] sm:$0xf]
        %v348 = vld [vmem:[%s1 + $0x34] sm:$0xf]
        %v349 = vld [vmem:[%s1 + $0x38] sm:$0xf]
        %v350 = vld [vmem:[%s1 + $0x3c] sm:$0xf]
        %v351 = vld [vmem:[%s1 + $0x40] sm:$0xf]
        %v352 = vld [vmem:[%s1 + $0x44] sm:$0xf]
        %v353 = vld [vmem:[%s1 + $0x48] sm:$0xf]
        %v354 = vld [vmem:[%s1 + $0x4c] sm:$0xf]
        %v355 = vld [vmem:[%s1 + $0x50] sm:$0xf]
        %v356 = vld [vmem:[%s1 + $0x54] sm:$0xf]
        %v357 = vld [vmem:[%s1 + $0x58] sm:$0xf]
        %v358 = vld [vmem:[%s1 + $0x5c] sm:$0xf]
        %v359 = vld [vmem:[%s1 + $0x60] sm:$0xf]
        %v360 = vld [vmem:[%s1 + $0x64] sm:$0xf]
        %v361 = vld [vmem:[%s1 + $0x68] sm:$0xf]
        %v362 = vld [vmem:[%s1 + $0x6c] sm:$0xf]
        %v363 = vld [vmem:[%s1 + $0x70] sm:$0xf]
        %v364 = vld [vmem:[%s1 + $0x74] sm:$0xf]
        %v365 = vld [vmem:[%s1 + $0x78] sm:$0xf]
        %v366 = vld [vmem:[%s1 + $0x7c] sm:$0xf]
        %v367 = vld [vmem:[%s2] sm:$0xff]
        %v368 = vld [vmem:[%s2 + $0x8] sm:$0xff]
        %v369 = vld [vmem:[%s2 + $0x10] sm:$0xff]
        %v370 = vld [vmem:[%s2 + $0x18] sm:$0xff]
        %v371 = vld [vmem:[%s2 + $0x20] sm:$0xff]
        %v372 = vld [vmem:[%s2 + $0x28] sm:$0xff]
        %v373 = vld [vmem:[%s2 + $0x30] sm:$0xff]
        %v374 = vld [vmem:[%s2 + $0x38] sm:$0xff]
        %v375 = vld [vmem:[%s2 + $0x40] sm:$0xff]
        %v376 = vld [vmem:[%s2 + $0x48] sm:$0xff]
        %v377 = vld [vmem:[%s2 + $0x50] sm:$0xff]
        %v378 = vld [vmem:[%s2 + $0x58] sm:$0xff]
        %v379 = vld [vmem:[%s2 + $0x60] sm:$0xff]
        %v380 = vld [vmem:[%s2 + $0x68] sm:$0xff]
        %v381 = vld [vmem:[%s2 + $0x70] sm:$0xff]
        %v382 = vld [vmem:[%s2 + $0x78] sm:$0xff]
        %v383 = vld [vmem:[%s2 + $0x80] sm:$0xff]
        %v384 = vld [vmem:[%s2 + $0x88] sm:$0xff]
        %v385 = vld [vmem:[%s2 + $0x90] sm:$0xff]
        %v386 = vld [vmem:[%s2 + $0x98] sm:$0xff]
        %v387 = vld [vmem:[%s2 + $0xa0] sm:$0xff]
        %v388 = vld [vmem:[%s2 + $0xa8] sm:$0xff]
        %v389 = vld [vmem:[%s2 + $0xb0] sm:$0xff]
        %v390 = vld [vmem:[%s2 + $0xb8] sm:$0xff]
        %v391 = vld [vmem:[%s2 + $0xc0] sm:$0xff]
        %v392 = vld [vmem:[%s2 + $0xc8] sm:$0xff]
        %v393 = vld [vmem:[%s2 + $0xd0] sm:$0xff]
        %v394 = vld [vmem:[%s2 + $0xd8] sm:$0xff]
        %v395 = vld [vmem:[%s2 + $0xe0] sm:$0xff]
        %v396 = vld [vmem:[%s2 + $0xe8] sm:$0xff]
        %v397 = vld [vmem:[%s2 + $0xf0] sm:$0xff]
        %v398 = vld [vmem:[%s2 + $0xf8] sm:$0xff]
        %400 = vset.pattern.permute.xlu0 0
        %401 = vperm.xlu0 %400, %v367
        %v402 = vpop.permute.xlu0 %401
        %405 = vset.pattern.permute.xlu0 0
        %406 = vperm.xlu0 %405, %v368
        %v407 = vpop.permute.xlu0 %406
        %410 = vset.pattern.permute.xlu0 0
        %411 = vperm.xlu0 %410, %v369
        %v412 = vpop.permute.xlu0 %411
        %415 = vset.pattern.permute.xlu0 0
        %416 = vperm.xlu0 %415, %v370
        %v417 = vpop.permute.xlu0 %416
        %420 = vset.pattern.permute.xlu0 0
        %421 = vperm.xlu0 %420, %v371
        %v422 = vpop.permute.xlu0 %421
        %425 = vset.pattern.permute.xlu0 0
        %426 = vperm.xlu0 %425, %v372
        %v427 = vpop.permute.xlu0 %426
        %430 = vset.pattern.permute.xlu0 0
        %431 = vperm.xlu0 %430, %v373
        %v432 = vpop.permute.xlu0 %431
        %435 = vset.pattern.permute.xlu0 0
        %436 = vperm.xlu0 %435, %v374
        %v437 = vpop.permute.xlu0 %436
        %440 = vset.pattern.permute.xlu0 0
        %441 = vperm.xlu0 %440, %v375
        %v442 = vpop.permute.xlu0 %441
        %445 = vset.pattern.permute.xlu0 0
        %446 = vperm.xlu0 %445, %v376
        %v447 = vpop.permute.xlu0 %446
        %450 = vset.pattern.permute.xlu0 0
        %451 = vperm.xlu0 %450, %v377
        %v452 = vpop.permute.xlu0 %451
        %455 = vset.pattern.permute.xlu0 0
        %456 = vperm.xlu0 %455, %v378
        %v457 = vpop.permute.xlu0 %456
        %460 = vset.pattern.permute.xlu0 0
        %461 = vperm.xlu0 %460, %v379
        %v462 = vpop.permute.xlu0 %461
        %465 = vset.pattern.permute.xlu0 0
        %466 = vperm.xlu0 %465, %v380
        %v467 = vpop.permute.xlu0 %466
        %470 = vset.pattern.permute.xlu0 0
        %471 = vperm.xlu0 %470, %v381
        %v472 = vpop.permute.xlu0 %471
        %475 = vset.pattern.permute.xlu0 0
        %476 = vperm.xlu0 %475, %v382
        %v477 = vpop.permute.xlu0 %476
        %480 = vset.pattern.permute.xlu0 0
        %481 = vperm.xlu0 %480, %v383
        %v482 = vpop.permute.xlu0 %481
        %485 = vset.pattern.permute.xlu0 0
        %486 = vperm.xlu0 %485, %v384
        %v487 = vpop.permute.xlu0 %486
        %490 = vset.pattern.permute.xlu0 0
        %491 = vperm.xlu0 %490, %v385
        %v492 = vpop.permute.xlu0 %491
        %495 = vset.pattern.permute.xlu0 0
        %496 = vperm.xlu0 %495, %v386
        %v497 = vpop.permute.xlu0 %496
        %500 = vset.pattern.permute.xlu0 0
        %501 = vperm.xlu0 %500, %v387
        %v502 = vpop.permute.xlu0 %501
        %505 = vset.pattern.permute.xlu0 0
        %506 = vperm.xlu0 %505, %v388
        %v507 = vpop.permute.xlu0 %506
        %510 = vset.pattern.permute.xlu0 0
        %511 = vperm.xlu0 %510, %v389
        %v512 = vpop.permute.xlu0 %511
        %515 = vset.pattern.permute.xlu0 0
        %516 = vperm.xlu0 %515, %v390
        %v517 = vpop.permute.xlu0 %516
        %520 = vset.pattern.permute.xlu0 0
        %521 = vperm.xlu0 %520, %v391
        %v522 = vpop.permute.xlu0 %521
        %525 = vset.pattern.permute.xlu0 0
        %526 = vperm.xlu0 %525, %v392
        %v527 = vpop.permute.xlu0 %526
        %530 = vset.pattern.permute.xlu0 0
        %531 = vperm.xlu0 %530, %v393
        %v532 = vpop.permute.xlu0 %531
        %535 = vset.pattern.permute.xlu0 0
        %536 = vperm.xlu0 %535, %v394
        %v537 = vpop.permute.xlu0 %536
        %540 = vset.pattern.permute.xlu0 0
        %541 = vperm.xlu0 %540, %v395
        %v542 = vpop.permute.xlu0 %541
        %545 = vset.pattern.permute.xlu0 0
        %546 = vperm.xlu0 %545, %v396
        %v547 = vpop.permute.xlu0 %546
        %550 = vset.pattern.permute.xlu0 0
        %551 = vperm.xlu0 %550, %v397
        %v552 = vpop.permute.xlu0 %551
        %555 = vset.pattern.permute.xlu0 0
        %556 = vperm.xlu0 %555, %v398
        %v557 = vpop.permute.xlu0 %556
        %v591 = vunpack.c.l.b16 %v335
        %v592 = vunpack.c.l.b16 %v336
        %v593 = vunpack.c.l.b16 %v337
        %v594 = vunpack.c.l.b16 %v338
        %v595 = vunpack.c.l.b16 %v339
        %v596 = vunpack.c.l.b16 %v340
        %v597 = vunpack.c.l.b16 %v341
        %v598 = vunpack.c.l.b16 %v342
        %v599 = vunpack.c.l.b16 %v343
        %v600 = vunpack.c.l.b16 %v344
        %v601 = vunpack.c.l.b16 %v345
        %v602 = vunpack.c.l.b16 %v346
        %v603 = vunpack.c.l.b16 %v347
        %v604 = vunpack.c.l.b16 %v348
        %v605 = vunpack.c.l.b16 %v349
        %v606 = vunpack.c.l.b16 %v350
        %v607 = vunpack.c.l.b16 %v351
        %v608 = vunpack.c.l.b16 %v352
        %v609 = vunpack.c.l.b16 %v353
        %v610 = vunpack.c.l.b16 %v354
        %v611 = vunpack.c.l.b16 %v355
        %v612 = vunpack.c.l.b16 %v356
        %v613 = vunpack.c.l.b16 %v357
        %v614 = vunpack.c.l.b16 %v358
        %v615 = vunpack.c.l.b16 %v359
        %v616 = vunpack.c.l.b16 %v360
        %v617 = vunpack.c.l.b16 %v361
        %v618 = vunpack.c.l.b16 %v362
        %v619 = vunpack.c.l.b16 %v363
        %v620 = vunpack.c.l.b16 %v364
        %v621 = vunpack.c.l.b16 %v365
        %v622 = vunpack.c.l.b16 %v366
        %v623 = vpack.c.b16 %v592, %v591
        %v624 = vpack.c.b16 %v594, %v593
        %v625 = vpack.c.b16 %v596, %v595
        %v626 = vpack.c.b16 %v598, %v597
        %v627 = vpack.c.b16 %v600, %v599
        %v628 = vpack.c.b16 %v602, %v601
        %v629 = vpack.c.b16 %v604, %v603
        %v630 = vpack.c.b16 %v606, %v605
        %v631 = vpack.c.b16 %v608, %v607
        %v632 = vpack.c.b16 %v610, %v609
        %v633 = vpack.c.b16 %v612, %v611
        %v634 = vpack.c.b16 %v614, %v613
        %v635 = vpack.c.b16 %v616, %v615
        %v636 = vpack.c.b16 %v618, %v617
        %v637 = vpack.c.b16 %v620, %v619
        %v638 = vpack.c.b16 %v622, %v621
        %v643 = vunpack.c.l.b16 %v331
        %v644 = vunpack.c.l.b16 %v332
        %v645 = vunpack.c.l.b16 %v333
        %v646 = vunpack.c.l.b16 %v334
        %v647 = vpack.c.b16 %v644, %v643
        %v648 = vpack.c.b16 %v646, %v645
        %vm651 = vcmask 261120
        %v653 = vsel %vm651, %v623, 0
        %v656 = vsel %vm651, %v624, 0
        %v659 = vsel %vm651, %v625, 0
        %v662 = vsel %vm651, %v626, 0
        %v665 = vsel %vm651, %v627, 0
        %v668 = vsel %vm651, %v628, 0
        %v671 = vsel %vm651, %v629, 0
        %v674 = vsel %vm651, %v630, 0
        %v677 = vsel %vm651, %v631, 0
        %v680 = vsel %vm651, %v632, 0
        %v683 = vsel %vm651, %v633, 0
        %v686 = vsel %vm651, %v634, 0
        %v689 = vsel %vm651, %v635, 0
        %v692 = vsel %vm651, %v636, 0
        %v695 = vsel %vm651, %v637, 0
        %v698 = vsel %vm651, %v638, 0
        %700 = vmatprep.subr.bf16.mxu0 0
        %701 = vmatpush1.bf16.msra.mxu0 %v647
        %702 = vmatprep.subr.bf16.mxu0 0
        %703 = vmatpush1.bf16.msra.mxu0 %v648
        %704 = vmatprep.subr.bf16.mxu0 0
        %705 = vmatpush1.bf16.msra.mxu0 0
        %706 = vmatprep.subr.bf16.mxu0 0
        %707 = vmatpush1.bf16.msra.mxu0 0
        %708 = vmatprep.subr.bf16.mxu0 0
        %709 = vmatpush1.bf16.msra.mxu0 0
        %710 = vmatprep.subr.bf16.mxu0 0
        %711 = vmatpush1.bf16.msra.mxu0 0
        %712 = vmatprep.subr.bf16.mxu0 0
        %713 = vmatpush1.bf16.msra.mxu0 0
        %714 = vmatprep.subr.bf16.mxu0 0
        %715 = vmatpush1.bf16.msra.mxu0 0
        %716 = vmatprep.subr.bf16.mxu0 0
        %717 = vmatpush1.bf16.msra.mxu0 0
        %718 = vmatprep.subr.bf16.mxu0 0
        %719 = vmatpush1.bf16.msra.mxu0 0
        %720 = vmatprep.subr.bf16.mxu0 0
        %721 = vmatpush1.bf16.msra.mxu0 0
        %722 = vmatprep.subr.bf16.mxu0 0
        %723 = vmatpush1.bf16.msra.mxu0 0
        %724 = vmatprep.subr.bf16.mxu0 0
        %725 = vmatpush1.bf16.msra.mxu0 0
        %726 = vmatprep.subr.bf16.mxu0 0
        %727 = vmatpush1.bf16.msra.mxu0 0
        %728 = vmatprep.subr.bf16.mxu0 0
        %729 = vmatpush1.bf16.msra.mxu0 0
        %730 = vmatprep.subr.bf16.mxu0 0
        %731 = vmatpush1.bf16.msra.mxu0 0
        %732 = vmatprep.mubr.bf16.mxu0 0
        %733 = vmatmul.mubr.bf16.gmra.mrb[0].mxu0 %v653
        %v734 = vpop.f32.mrb[0].mxu0
        %v735 = vadd.f32 %v402, %v734
        %v736 = vpop.f32.mrb[0].mxu0
        %v737 = vpop.f32.mrb[0].mxu0
        %v738 = vadd.f32 %v407, %v737
        %v739 = vpop.f32.mrb[0].mxu0
        %740 = vmatprep.mubr.bf16.mxu0 0
        %741 = vmatmul.mubr.bf16.gmra.mrb[0].mxu0 %v656
        %v742 = vpop.f32.mrb[0].mxu0
        %v743 = vadd.f32 %v412, %v742
        %v744 = vpop.f32.mrb[0].mxu0
        %v745 = vpop.f32.mrb[0].mxu0
        %v746 = vadd.f32 %v417, %v745
        %v747 = vpop.f32.mrb[0].mxu0
        %748 = vmatprep.mubr.bf16.mxu0 0
        %749 = vmatmul.mubr.bf16.gmra.mrb[0].mxu0 %v659
        %v750 = vpop.f32.mrb[0].mxu0
        %v751 = vadd.f32 %v422, %v750
        %v752 = vpop.f32.mrb[0].mxu0
        %v753 = vpop.f32.mrb[0].mxu0
        %v754 = vadd.f32 %v427, %v753
        %v755 = vpop.f32.mrb[0].mxu0
        %756 = vmatprep.mubr.bf16.mxu0 0
        %757 = vmatmul.mubr.bf16.gmra.mrb[0].mxu0 %v662
        %v758 = vpop.f32.mrb[0].mxu0
        %v759 = vadd.f32 %v432, %v758
        %v760 = vpop.f32.mrb[0].mxu0
        %v761 = vpop.f32.mrb[0].mxu0
        %v762 = vadd.f32 %v437, %v761
        %v763 = vpop.f32.mrb[0].mxu0
        %764 = vmatprep.mubr.bf16.mxu0 0
        %765 = vmatmul.mubr.bf16.gmra.mrb[0].mxu0 %v665
        %v766 = vpop.f32.mrb[0].mxu0
        %v767 = vadd.f32 %v442, %v766
        %v768 = vpop.f32.mrb[0].mxu0
        %v769 = vpop.f32.mrb[0].mxu0
        %v770 = vadd.f32 %v447, %v769
        %v771 = vpop.f32.mrb[0].mxu0
        %772 = vmatprep.mubr.bf16.mxu0 0
        %773 = vmatmul.mubr.bf16.gmra.mrb[0].mxu0 %v668
        %v774 = vpop.f32.mrb[0].mxu0
        %v775 = vadd.f32 %v452, %v774
        %v776 = vpop.f32.mrb[0].mxu0
        %v777 = vpop.f32.mrb[0].mxu0
        %v778 = vadd.f32 %v457, %v777
        %v779 = vpop.f32.mrb[0].mxu0
        %780 = vmatprep.mubr.bf16.mxu0 0
        %781 = vmatmul.mubr.bf16.gmra.mrb[0].mxu0 %v671
        %v782 = vpop.f32.mrb[0].mxu0
        %v783 = vadd.f32 %v462, %v782
        %v784 = vpop.f32.mrb[0].mxu0
        %v785 = vpop.f32.mrb[0].mxu0
        %v786 = vadd.f32 %v467, %v785
        %v787 = vpop.f32.mrb[0].mxu0
        %788 = vmatprep.mubr.bf16.mxu0 0
        %789 = vmatmul.mubr.bf16.gmra.mrb[0].mxu0 %v674
        %v790 = vpop.f32.mrb[0].mxu0
        %v791 = vadd.f32 %v472, %v790
        %v792 = vpop.f32.mrb[0].mxu0
        %v793 = vpop.f32.mrb[0].mxu0
        %v794 = vadd.f32 %v477, %v793
        %v795 = vpop.f32.mrb[0].mxu0
        %796 = vmatprep.mubr.bf16.mxu0 0
        %797 = vmatmul.mubr.bf16.gmra.mrb[0].mxu0 %v677
        %v798 = vpop.f32.mrb[0].mxu0
        %v799 = vadd.f32 %v482, %v798
        %v800 = vpop.f32.mrb[0].mxu0
        %v801 = vpop.f32.mrb[0].mxu0
        %v802 = vadd.f32 %v487, %v801
        %v803 = vpop.f32.mrb[0].mxu0
        %804 = vmatprep.mubr.bf16.mxu0 0
        %805 = vmatmul.mubr.bf16.gmra.mrb[0].mxu0 %v680
        %v806 = vpop.f32.mrb[0].mxu0
        %v807 = vadd.f32 %v492, %v806
        %v808 = vpop.f32.mrb[0].mxu0
        %v809 = vpop.f32.mrb[0].mxu0
        %v810 = vadd.f32 %v497, %v809
        %v811 = vpop.f32.mrb[0].mxu0
        %812 = vmatprep.mubr.bf16.mxu0 0
        %813 = vmatmul.mubr.bf16.gmra.mrb[0].mxu0 %v683
        %v814 = vpop.f32.mrb[0].mxu0
        %v815 = vadd.f32 %v502, %v814
        %v816 = vpop.f32.mrb[0].mxu0
        %v817 = vpop.f32.mrb[0].mxu0
        %v818 = vadd.f32 %v507, %v817
        %v819 = vpop.f32.mrb[0].mxu0
        %820 = vmatprep.mubr.bf16.mxu0 0
        %821 = vmatmul.mubr.bf16.gmra.mrb[0].mxu0 %v686
        %v822 = vpop.f32.mrb[0].mxu0
        %v823 = vadd.f32 %v512, %v822
        %v824 = vpop.f32.mrb[0].mxu0
        %v825 = vpop.f32.mrb[0].mxu0
        %v826 = vadd.f32 %v517, %v825
        %v827 = vpop.f32.mrb[0].mxu0
        %828 = vmatprep.mubr.bf16.mxu0 0
        %829 = vmatmul.mubr.bf16.gmra.mrb[0].mxu0 %v689
        %v830 = vpop.f32.mrb[0].mxu0
        %v831 = vadd.f32 %v522, %v830
        %v832 = vpop.f32.mrb[0].mxu0
        %v833 = vpop.f32.mrb[0].mxu0
        %v834 = vadd.f32 %v527, %v833
        %v835 = vpop.f32.mrb[0].mxu0
        %836 = vmatprep.mubr.bf16.mxu0 0
        %837 = vmatmul.mubr.bf16.gmra.mrb[0].mxu0 %v692
        %v838 = vpop.f32.mrb[0].mxu0
        %v839 = vadd.f32 %v532, %v838
        %v840 = vpop.f32.mrb[0].mxu0
        %v841 = vpop.f32.mrb[0].mxu0
        %v842 = vadd.f32 %v537, %v841
        %v843 = vpop.f32.mrb[0].mxu0
        %844 = vmatprep.mubr.bf16.mxu0 0
        %845 = vmatmul.mubr.bf16.gmra.mrb[0].mxu0 %v695
        %v846 = vpop.f32.mrb[0].mxu0
        %v847 = vadd.f32 %v542, %v846
        %v848 = vpop.f32.mrb[0].mxu0
        %v849 = vpop.f32.mrb[0].mxu0
        %v850 = vadd.f32 %v547, %v849
        %v851 = vpop.f32.mrb[0].mxu0
        %852 = vmatprep.mubr.bf16.mxu0 0
        %853 = vmatmul.mubr.bf16.gmra.mrb[0].mxu0 %v698
        %v854 = vpop.f32.mrb[0].mxu0
        %v855 = vadd.f32 %v552, %v854
        %v856 = vpop.f32.mrb[0].mxu0
        %v857 = vpop.f32.mrb[0].mxu0
        %v858 = vadd.f32 %v557, %v857
        %v859 = vpop.f32.mrb[0].mxu0
        %860 = vdwg.mxu0
        %v861 = vmax.f32 %v735, 0.0
        %v862 = vmax.f32 %v738, 0.0
        %v863 = vmax.f32 %v743, 0.0
        %v864 = vmax.f32 %v746, 0.0
        %v865 = vmax.f32 %v751, 0.0
        %v866 = vmax.f32 %v754, 0.0
        %v867 = vmax.f32 %v759, 0.0
        %v868 = vmax.f32 %v762, 0.0
        %v869 = vmax.f32 %v767, 0.0
        %v870 = vmax.f32 %v770, 0.0
        %v871 = vmax.f32 %v775, 0.0
        %v872 = vmax.f32 %v778, 0.0
        %v873 = vmax.f32 %v783, 0.0
        %v874 = vmax.f32 %v786, 0.0
        %v875 = vmax.f32 %v791, 0.0
        %v876 = vmax.f32 %v794, 0.0
        %v877 = vmax.f32 %v799, 0.0
        %v878 = vmax.f32 %v802, 0.0
        %v879 = vmax.f32 %v807, 0.0
        %v880 = vmax.f32 %v810, 0.0
        %v881 = vmax.f32 %v815, 0.0
        %v882 = vmax.f32 %v818, 0.0
        %v883 = vmax.f32 %v823, 0.0
        %v884 = vmax.f32 %v826, 0.0
        %v885 = vmax.f32 %v831, 0.0
        %v886 = vmax.f32 %v834, 0.0
        %v887 = vmax.f32 %v839, 0.0
        %v888 = vmax.f32 %v842, 0.0
        %v889 = vmax.f32 %v847, 0.0
        %v890 = vmax.f32 %v850, 0.0
        %v891 = vmax.f32 %v855, 0.0
        %v892 = vmax.f32 %v858, 0.0
        %v893 = vld [vmem:[%s3] sm:$0xff]
        %v894 = vld [vmem:[%s3 + $0x8] sm:$0x11]
        %v895 = vpack.c.bf16 %v862, %v861
        %v896 = vpack.c.bf16 %v864, %v863
        %v897 = vpack.c.bf16 %v866, %v865
        %v898 = vpack.c.bf16 %v868, %v867
        %v899 = vpack.c.bf16 %v870, %v869
        %v900 = vpack.c.bf16 %v872, %v871
        %v901 = vpack.c.bf16 %v874, %v873
        %v902 = vpack.c.bf16 %v876, %v875
        %v903 = vpack.c.bf16 %v878, %v877
        %v904 = vpack.c.bf16 %v880, %v879
        %v905 = vpack.c.bf16 %v882, %v881
        %v906 = vpack.c.bf16 %v884, %v883
        %v907 = vpack.c.bf16 %v886, %v885
        %v908 = vpack.c.bf16 %v888, %v887
        %v909 = vpack.c.bf16 %v890, %v889
        %v910 = vpack.c.bf16 %v892, %v891
        %v911 = vld [vmem:[%s4] sm:$0xff]
        %v912 = vld [vmem:[%s4 + $0x8] sm:$0x3]
        %914 = vset.pattern.permute.xlu0 0
        %915 = vperm.xlu0 %914, %v911
        %v916 = vpop.permute.xlu0 %915
        %919 = vset.pattern.permute.xlu0 0
        %920 = vperm.xlu0 %919, %v912
        %v921 = vpop.permute.xlu0 %920
        %v925 = vunpack.c.l.b16 %v893
        %v926 = vunpack.c.h.b16 %v893
        %v927 = vunpack.c.l.b16 %v894
        %v928 = vunpack.c.h.b16 %v894
        %v929 = vpack.c.b16 %v927, %v925
        %v930 = vpack.c.b16 %v928, %v926
        %933 = vmatprep.subr.bf16.mxu0 0
        %934 = vmatpush1.bf16.msra.mxu0 %v895
        %935 = vmatprep.subr.bf16.mxu0 0
        %936 = vmatpush1.bf16.msra.mxu0 %v896
        %937 = vmatprep.subr.bf16.mxu0 0
        %938 = vmatpush1.bf16.msra.mxu0 %v897
        %939 = vmatprep.subr.bf16.mxu0 0
        %940 = vmatpush1.bf16.msra.mxu0 %v898
        %941 = vmatprep.subr.bf16.mxu0 0
        %942 = vmatpush1.bf16.msra.mxu0 %v899
        %943 = vmatprep.subr.bf16.mxu0 0
        %944 = vmatpush1.bf16.msra.mxu0 %v900
        %945 = vmatprep.subr.bf16.mxu0 0
        %946 = vmatpush1.bf16.msra.mxu0 %v901
        %947 = vmatprep.subr.bf16.mxu0 0
        %948 = vmatpush1.bf16.msra.mxu0 %v902
        %949 = vmatprep.subr.bf16.mxu0 0
        %950 = vmatpush1.bf16.msra.mxu0 %v903
        %951 = vmatprep.subr.bf16.mxu0 0
        %952 = vmatpush1.bf16.msra.mxu0 %v904
        %953 = vmatprep.subr.bf16.mxu0 0
        %954 = vmatpush1.bf16.msra.mxu0 %v905
        %955 = vmatprep.subr.bf16.mxu0 0
        %956 = vmatpush1.bf16.msra.mxu0 %v906
        %957 = vmatprep.subr.bf16.mxu0 0
        %958 = vmatpush1.bf16.msra.mxu0 %v907
        %959 = vmatprep.subr.bf16.mxu0 0
        %960 = vmatpush1.bf16.msra.mxu0 %v908
        %961 = vmatprep.subr.bf16.mxu0 0
        %962 = vmatpush1.bf16.msra.mxu0 %v909
        %963 = vmatprep.subr.bf16.mxu0 0
        %964 = vmatpush1.bf16.msra.mxu0 %v910
        %965 = vmatprep.mubr.bf16.mxu0 %v930
        %966 = vmatmul.mubr.bf16.gmra.mrb[0].mxu0 %v929
        %v967 = vpop.f32.mrb[0].mxu0
        %v968 = vadd.f32 %v916, %v967
        %v969 = vpop.f32.mrb[0].mxu0
        %v970 = vpop.f32.mrb[0].mxu0
        %v971 = vadd.f32 %v921, %v970
        %v972 = vpop.f32.mrb[0].mxu0
        %973 = vdwg.mxu0
        %v974 = vmax.f32 %v968, 0.0
        %v975 = vmax.f32 %v971, 0.0
        %v976 = vld [vmem:[%s5] sm:$0xff]
        %v977 = vld [vmem:[%s5 + $0x8] sm:$0x3]
        %979 = vset.pattern.permute.xlu0 0
        %980 = vperm.xlu0 %979, %v976
        %v981 = vpop.permute.xlu0 %980
        %984 = vset.pattern.permute.xlu0 0
        %985 = vperm.xlu0 %984, %v977
        %v986 = vpop.permute.xlu0 %985
        %v988 = vmul.f32 %v974, %v981
        %v989 = vmul.f32 %v975, %v986
        %vm990 = vcmask 1041408
        %v991 = vsel %vm990, %v989, 0.0
        %v992 = vadd.f32 %v988, %v991
        %v993 = vrot.slane %v992, 4
        %v994 = vadd.f32 %v992, %v993
        %v995 = vrot.slane %v994, 2
        %v996 = vadd.f32 %v994, %v995
        %v997 = vrot.slane %v996, 1
        %v998 = vadd.f32 %v996, %v997
        %v999 = vld [vmem:[#allocation2] sm:$0x1]
        %1001 = vset.pattern.permute.xlu0 0
        %1002 = vperm.xlu0 %1001, %v999
        %v1003 = vpop.permute.xlu0 %1002
        %v1005 = vlaneseq
        %v1006 = vshrl.u32 %v1005, 7
        %v1007 = vsub.s32 0, %v1006
        %v1008 = vrot.slane %v1003, %v1007
        %v1009 = vadd.f32 %v998, %v1008
        %v1010 = vmax.f32 %v1009, 0.0
        %1011 = vst [vmem:[%s329] sm:$0x1] %v1010
        %p1012 = scmp.lt.s32.totalorder %s20, 1
        %s1013 = scalar_select %p1012, %s20, 1
        %s1014 = scalar_lea.vmem %s7, %s1013
        // Predicated region
        $region90: #{my_network_forward.1} parent=84 // pred_check
          %p1015 = pneg %p190
        $region91: #{my_network_forward.1} parent=84 // pred_check_branch
          %1017 = sbr.rel (%p1015) target = $region93
        $region92: #{my_network_forward.1} parent=84 // pred_region
          _
        $region93: #{my_network_forward.1} parent=84 // pred_fallthru
          _
      $region85: #{my_network_forward.1} parent=5 // pred_fallthru
        _
      %p1018 = scmp.le.s32.totalorder 2, %s15
      // Predicated region
      $region94: #{my_network_forward.1} parent=5 // pred_check
        %p1019 = pneg %p1018
      $region95: #{my_network_forward.1} parent=5 // pred_check_branch
        %1021 = sbr.rel (%p1019) target = $region97
      $region96: #{my_network_forward.1} parent=5 // pred_region
        %s1022 = ssub.s32 %s15, 2
        // Predicated region
        $region98: #{my_network_forward.1} parent=96 // pred_check
          %p1023 = pneg %p196
        $region99: #{my_network_forward.1} parent=96 // pred_check_branch
          %1025 = sbr.rel (%p1023) target = $region101
        $region100: #{my_network_forward.1} parent=96 // pred_region
          %p1026 = scmp.lt.s32.totalorder %s21, 1
          %s1027 = scalar_select %p1026, %s21, 1
          %s1028 = scalar_lea.vmem %s7, %s1027
        $region101: #{my_network_forward.1} parent=96 // pred_fallthru
          _
      $region97: #{my_network_forward.1} parent=5 // pred_fallthru
        _
    $region6: #{my_network_forward.1} parent=1 // loop_footer
      %s19 = sadd.s32 1, %s15
    $region7: #{my_network_forward.1} parent=1 // loop_footer_branch
      %14 = sbr.rel target = $region3
    $region8: #{my_network_forward.1} parent=1 // loop_exit
      _

</llo_original>
